<compile_context>
chip_gen: v7x
topology: tpu7x:2x2x1
jax: 0.10.0
libtpu: 0.0.40
codegen_flags: <defaults>
</compile_context>

<pallas_src>
import functools

import jax
import jax.numpy as jnp
from jax import lax
from jax.experimental import pallas as pl
from jax.experimental.pallas import tpu as pltpu


def _round_up(x, m):
    return (x + m - 1) // m * m


def _matmul_stats_kernel(x_ref, w_ref, y_ref, s_ref, ss_ref, *, tb, b_total):
    # x_ref : [tb, in_dim]   f32, streamed batch tile
    # w_ref : [in_dim, Cp]   bf16, resident weight (constant index_map)
    # y_ref : [tb, Cp]       f32, streamed output tile
    # s_ref / ss_ref : [tb, Cp] f32 accumulators, resident across the grid
    i = pl.program_id(0)

    @pl.when(i == 0)
    def _():
        s_ref[...] = jnp.zeros_like(s_ref)
        ss_ref[...] = jnp.zeros_like(ss_ref)

    x = x_ref[...].astype(jnp.bfloat16)
    y = jnp.dot(x, w_ref[...], preferred_element_type=jnp.float32)  # MXU
    y_ref[...] = y

    # Mask rows beyond the true batch (partial last tile). Use where() rather
    # than multiply so garbage/NaN in out-of-bounds rows cannot poison stats.
    row = i * tb + lax.broadcasted_iota(jnp.int32, y.shape, 0)
    ym = jnp.where(row < b_total, y, 0.0)
    s_ref[...] = s_ref[...] + ym
    ss_ref[...] = ss_ref[...] + ym * ym


def _bn_tanh_kernel(y_ref, scale_ref, shift_ref, h_ref):
    # Folded BN + tanh: one FMA (VPU) + tanh (EUP slot).
    h_ref[...] = jnp.tanh(
        y_ref[...] * scale_ref[...] + shift_ref[...]
    ).astype(h_ref.dtype)


@jax.jit
def my_hash_head_forward(global_feature, local_feature, w_hash, bn_gamma, bn_beta):
    """Pallas implementation of MyHASHHead.forward (minus the backbone call).

    Args:
      global_feature: [B, in_dim] float32
      local_feature:  [B, S, in_dim] float32 (passed through untouched)
      w_hash:         [in_dim, code_dim] float32 (== torch weight [out,in].T)
      bn_gamma:       [1, code_dim] float32
      bn_beta:        [1, code_dim] float32
    Returns:
      (h, global_feature, local_feature) with h: [B, code_dim] float32
    """
    eps = 1e-5
    B, in_dim = global_feature.shape
    code_dim = w_hash.shape[1]

    cp = _round_up(code_dim, 128)          # lane-dense output width
    tb = B if B <= 512 else 512            # batch tile: full dim or multiple of 8
    nb = pl.cdiv(B, tb)

    # Pad params along the code axis; cast W to bf16 for the native MXU path.
    w_p = jnp.zeros((in_dim, cp), jnp.bfloat16).at[:, :code_dim].set(
        w_hash.astype(jnp.bfloat16))
    gamma_p = jnp.ones((1, cp), jnp.float32).at[:, :code_dim].set(
        bn_gamma.reshape(1, code_dim).astype(jnp.float32))
    beta_p = jnp.zeros((1, cp), jnp.float32).at[:, :code_dim].set(
        bn_beta.reshape(1, code_dim).astype(jnp.float32))

    kern1 = functools.partial(_matmul_stats_kernel, tb=tb, b_total=B)
    y, s_part, ss_part = pl.pallas_call(
        kern1,
        grid=(nb,),
        in_specs=[
            pl.BlockSpec((tb, in_dim), lambda i: (i, 0)),   # streamed x tiles
            pl.BlockSpec((in_dim, cp), lambda i: (0, 0)),   # resident weight
        ],
        out_specs=(
            pl.BlockSpec((tb, cp), lambda i: (i, 0)),       # y tiles
            pl.BlockSpec((tb, cp), lambda i: (0, 0)),       # sum accumulator
            pl.BlockSpec((tb, cp), lambda i: (0, 0)),       # sum-sq accumulator
        ),
        out_shape=(
            jax.ShapeDtypeStruct((B, cp), jnp.float32),
            jax.ShapeDtypeStruct((tb, cp), jnp.float32),
            jax.ShapeDtypeStruct((tb, cp), jnp.float32),
        ),
        compiler_params=pltpu.CompilerParams(
            dimension_semantics=("arbitrary",)),
        cost_estimate=pl.CostEstimate(
            flops=2 * B * in_dim * cp,
            transcendentals=0,
            bytes_accessed=B * in_dim * 4 + in_dim * cp * 2
                           + B * cp * 4 + 2 * tb * cp * 4),
    )(global_feature, w_p)

    # Finalize BN statistics on a tiny [1, Cp] slab and fold into one FMA.
    s = jnp.sum(s_part, axis=0, keepdims=True)
    ss = jnp.sum(ss_part, axis=0, keepdims=True)
    mean = s / B
    var = jnp.maximum(ss / B - mean * mean, 0.0)   # biased variance (BN default)
    scale = gamma_p * lax.rsqrt(var + eps)
    shift = beta_p - mean * scale

    tb2 = B if B <= 1024 else 1024
    nb2 = pl.cdiv(B, tb2)
    h_p = pl.pallas_call(
        _bn_tanh_kernel,
        grid=(nb2,),
        in_specs=[
            pl.BlockSpec((tb2, cp), lambda i: (i, 0)),
            pl.BlockSpec((1, cp), lambda i: (0, 0)),
            pl.BlockSpec((1, cp), lambda i: (0, 0)),
        ],
        out_specs=pl.BlockSpec((tb2, cp), lambda i: (i, 0)),
        out_shape=jax.ShapeDtypeStruct((B, cp), jnp.float32),
        input_output_aliases={0: 0},               # reuse the y buffer for h
        compiler_params=pltpu.CompilerParams(
            dimension_semantics=("parallel",)),
        cost_estimate=pl.CostEstimate(
            flops=2 * B * cp,
            transcendentals=B * cp,
            bytes_accessed=3 * B * cp * 4),
    )(y, scale, shift)

    h = h_p[:, :code_dim]
    return h, global_feature, local_feature


def _trunc_normal(key, shape, std=0.02):
    # trunc_normal_(std=0.02) ~ N(0, std^2) truncated to [-2std, 2std]
    return std * jax.random.truncated_normal(key, -2.0, 2.0, shape, jnp.float32)


if __name__ == "__main__":
    B = 8          # batch
    S = 8          # number of local tokens
    in_dim = 32    # backbone embedding dim (small synthetic size)
    code_dim = 32  # hash code dim

    key = jax.random.PRNGKey(0)
    k_gf, k_lf, k_w = jax.random.split(key, 3)

    # Synthetic backbone outputs.
    global_feature = jax.random.normal(k_gf, (B, in_dim), jnp.float32)
    local_feature = jax.random.normal(k_lf, (B, S, in_dim), jnp.float32)

    # Parameters (matching the module's __init__):
    #   hash: nn.Linear(in_dim, code_dim, bias=False), trunc_normal std=0.02
    #   bn_h: nn.BatchNorm1d(code_dim) -> gamma=1, beta=0
    w_torch_layout = _trunc_normal(k_w, (code_dim, in_dim))  # torch weight [out,in]
    w_hash = jnp.transpose(w_torch_layout)                   # [in_dim, code_dim]
    bn_gamma = jnp.ones((1, code_dim), jnp.float32)
    bn_beta = jnp.zeros((1, code_dim), jnp.float32)

    h, gf_out, lf_out = my_hash_head_forward(
        global_feature, local_feature, w_hash, bn_gamma, bn_beta)
    jax.block_until_ready((h, gf_out, lf_out))

    # Pure-JAX reference with the same bf16-rounded matmul operands
    # (MXU takes bf16 inputs with f32 accumulation).
    xb = global_feature.astype(jnp.bfloat16).astype(jnp.float32)
    wb = w_hash.astype(jnp.bfloat16).astype(jnp.float32)
    y_ref = jnp.dot(xb, wb, precision=jax.lax.Precision.HIGHEST)
    mean = jnp.mean(y_ref, axis=0, keepdims=True)
    var = jnp.mean((y_ref - mean) ** 2, axis=0, keepdims=True)
    h_ref = jnp.tanh((y_ref - mean) / jnp.sqrt(var + 1e-5) * bn_gamma + bn_beta)

    assert h.shape == (B, code_dim)
    assert gf_out.shape == global_feature.shape
    assert lf_out.shape == local_feature.shape
    assert jnp.allclose(h, h_ref, atol=5e-3, rtol=5e-3), "mismatch vs reference"

    print("KERNEL_OK")
</pallas_src>

<mosaic_0001>
module attributes {stable_mosaic.version = 11 : i64} {
  func.func @_bn_tanh_kernel(%arg0: i32, %arg1: memref<8x128xf32, #tpu.memory_space<vmem>>, %arg2: memref<1x128xf32, #tpu.memory_space<vmem>>, %arg3: memref<1x128xf32, #tpu.memory_space<vmem>>, %arg4: memref<8x128xf32, #tpu.memory_space<vmem>>) attributes {dimension_semantics = [#tpu.dimension_semantics<parallel>], iteration_bounds = array<i64: 1>, scalar_prefetch = 0 : i64, scratch_operands = 0 : i64, tpu.core_type = #tpu.core_type<tc>, window_params = [{transform_indices = @transform_0, window_bounds = array<i64: 8, 128>}, {pipeline_mode = #tpu.pipeline_mode<synchronous>, transform_indices = @transform_1, window_bounds = array<i64: 1, 128>}, {pipeline_mode = #tpu.pipeline_mode<synchronous>, transform_indices = @transform_2, window_bounds = array<i64: 1, 128>}, {transform_indices = @transform_3, window_bounds = array<i64: 8, 128>}]} {
    %c0 = arith.constant 0 : index
    %c0_0 = arith.constant 0 : index
    %0 = vector.load %arg1[%c0, %c0_0] : memref<8x128xf32, #tpu.memory_space<vmem>>, vector<8x128xf32>
    %c0_1 = arith.constant 0 : index
    %c0_2 = arith.constant 0 : index
    %1 = vector.load %arg2[%c0_1, %c0_2] : memref<1x128xf32, #tpu.memory_space<vmem>>, vector<1x128xf32>
    %2 = vector.broadcast %1 : vector<1x128xf32> to vector<8x128xf32>
    %3 = arith.mulf %0, %2 : vector<8x128xf32>
    %c0_3 = arith.constant 0 : index
    %c0_4 = arith.constant 0 : index
    %4 = vector.load %arg3[%c0_3, %c0_4] : memref<1x128xf32, #tpu.memory_space<vmem>>, vector<1x128xf32>
    %5 = vector.broadcast %4 : vector<1x128xf32> to vector<8x128xf32>
    %6 = arith.addf %3, %5 : vector<8x128xf32>
    %7 = math.tanh %6 : vector<8x128xf32>
    %c0_5 = arith.constant 0 : index
    %c0_6 = arith.constant 0 : index
    %8 = vector.load %arg4[%c0_5, %c0_6] : memref<8x128xf32, #tpu.memory_space<vmem>>, vector<8x128xf32>
    tpu.vector_store %arg4[%c0_5, %c0_6], %7 {strides = array<i32>} : memref<8x128xf32, #tpu.memory_space<vmem>>, vector<8x128xf32>,
    return
  }
  func.func @transform_0(%arg0: i32) -> (i32, i32) {
    %c0_i32 = arith.constant 0 : i32
    %c0_i32_0 = arith.constant 0 : i32
    return %arg0, %c0_i32 : i32, i32
  }
  func.func @transform_1(%arg0: i32) -> (i32, i32) {
    %c0_i32 = arith.constant 0 : i32
    %c0_i32_0 = arith.constant 0 : i32
    %c0_i32_1 = arith.constant 0 : i32
    return %c0_i32, %c0_i32_0 : i32, i32
  }
  func.func @transform_2(%arg0: i32) -> (i32, i32) {
    %c0_i32 = arith.constant 0 : i32
    %c0_i32_0 = arith.constant 0 : i32
    %c0_i32_1 = arith.constant 0 : i32
    return %c0_i32, %c0_i32_0 : i32, i32
  }
  func.func @transform_3(%arg0: i32) -> (i32, i32) {
    %c0_i32 = arith.constant 0 : i32
    %c0_i32_0 = arith.constant 0 : i32
    return %arg0, %c0_i32 : i32, i32
  }
}

module attributes {stable_mosaic.version = 11 : i64} {
  func.func @_matmul_stats_kernel(%arg0: i32, %arg1: memref<8x32xf32, #tpu.memory_space<vmem>>, %arg2: memref<32x128xbf16, #tpu.memory_space<vmem>>, %arg3: memref<8x128xf32, #tpu.memory_space<vmem>>, %arg4: memref<8x128xf32, #tpu.memory_space<vmem>>, %arg5: memref<8x128xf32, #tpu.memory_space<vmem>>) attributes {dimension_semantics = [#tpu.dimension_semantics<arbitrary>], iteration_bounds = array<i64: 1>, scalar_prefetch = 0 : i64, scratch_operands = 0 : i64, tpu.core_type = #tpu.core_type<tc>, window_params = [{transform_indices = @transform_0, window_bounds = array<i64: 8, 32>}, {pipeline_mode = #tpu.pipeline_mode<synchronous>, transform_indices = @transform_1, window_bounds = array<i64: 32, 128>}, {transform_indices = @transform_2, window_bounds = array<i64: 8, 128>}, {pipeline_mode = #tpu.pipeline_mode<synchronous>, transform_indices = @transform_3, window_bounds = array<i64: 8, 128>}, {pipeline_mode = #tpu.pipeline_mode<synchronous>, transform_indices = @transform_4, window_bounds = array<i64: 8, 128>}]} {
    %c0_i32 = arith.constant 0 : i32
    %0 = arith.cmpi eq, %arg0, %c0_i32 : i32
    %1 = arith.extui %0 : i1 to i32
    %c0_i32_0 = arith.constant 0 : i32
    %2 = arith.cmpi ne, %1, %c0_i32_0 : i32
    scf.if %2 {
      %cst_16 = arith.constant 0.000000e+00 : f32
      %23 = vector.broadcast %cst_16 : f32 to vector<8x128xf32>
      %c0_17 = arith.constant 0 : index
      %c0_18 = arith.constant 0 : index
      %24 = vector.load %arg4[%c0_17, %c0_18] : memref<8x128xf32, #tpu.memory_space<vmem>>, vector<8x128xf32>
      tpu.vector_store %arg4[%c0_17, %c0_18], %23 {strides = array<i32>} : memref<8x128xf32, #tpu.memory_space<vmem>>, vector<8x128xf32>,
      %cst_19 = arith.constant 0.000000e+00 : f32
      %25 = vector.broadcast %cst_19 : f32 to vector<8x128xf32>
      %c0_20 = arith.constant 0 : index
      %c0_21 = arith.constant 0 : index
      %26 = vector.load %arg5[%c0_20, %c0_21] : memref<8x128xf32, #tpu.memory_space<vmem>>, vector<8x128xf32>
      tpu.vector_store %arg5[%c0_20, %c0_21], %25 {strides = array<i32>} : memref<8x128xf32, #tpu.memory_space<vmem>>, vector<8x128xf32>,
    } else {
    }
    %c0 = arith.constant 0 : index
    %c0_1 = arith.constant 0 : index
    %3 = vector.load %arg1[%c0, %c0_1] : memref<8x32xf32, #tpu.memory_space<vmem>>, vector<8x32xf32>
    %4 = arith.truncf %3 : vector<8x32xf32> to vector<8x32xbf16>
    %c0_2 = arith.constant 0 : index
    %c0_3 = arith.constant 0 : index
    %5 = vector.load %arg2[%c0_2, %c0_3] : memref<32x128xbf16, #tpu.memory_space<vmem>>, vector<32x128xbf16>
    %cst = arith.constant dense<0.000000e+00> : vector<8x128xf32>
    %6 = tpu.matmul %4, %5, %cst {dimension_numbers = #tpu.dot_dimension_numbers<[1], [0], [0], [1], [0, 0, 1, 1], [], []>} : vector<8x32xbf16>, vector<32x128xbf16>, vector<8x128xf32> -> vector<8x128xf32>
    %c0_4 = arith.constant 0 : index
    %c0_5 = arith.constant 0 : index
    %7 = vector.load %arg3[%c0_4, %c0_5] : memref<8x128xf32, #tpu.memory_space<vmem>>, vector<8x128xf32>
    tpu.vector_store %arg3[%c0_4, %c0_5], %6 {strides = array<i32>} : memref<8x128xf32, #tpu.memory_space<vmem>>, vector<8x128xf32>,
    %c8_i32 = arith.constant 8 : i32
    %8 = arith.muli %arg0, %c8_i32 : i32
    %9 = tpu.iota {dimensions = array<i32: 0>} : vector<8x128xi32>
    %10 = vector.broadcast %8 : i32 to vector<8x128xi32>
    %11 = arith.addi %10, %9 : vector<8x128xi32>
    %c8_i32_6 = arith.constant 8 : i32
    %12 = vector.broadcast %c8_i32_6 : i32 to vector<8x128xi32>
    %13 = arith.cmpi slt, %11, %12 : vector<8x128xi32>
    %cst_7 = arith.constant 0.000000e+00 : f32
    %14 = vector.broadcast %cst_7 : f32 to vector<8x128xf32>
    %15 = arith.select %13, %6, %14 : vector<8x128xi1>, vector<8x128xf32>
    %c0_8 = arith.constant 0 : index
    %c0_9 = arith.constant 0 : index
    %16 = vector.load %arg4[%c0_8, %c0_9] : memref<8x128xf32, #tpu.memory_space<vmem>>, vector<8x128xf32>
    %17 = arith.addf %16, %15 : vector<8x128xf32>
    %c0_10 = arith.constant 0 : index
    %c0_11 = arith.constant 0 : index
    %18 = vector.load %arg4[%c0_10, %c0_11] : memref<8x128xf32, #tpu.memory_space<vmem>>, vector<8x128xf32>
    tpu.vector_store %arg4[%c0_10, %c0_11], %17 {strides = array<i32>} : memref<8x128xf32, #tpu.memory_space<vmem>>, vector<8x128xf32>,
    %c0_12 = arith.constant 0 : index
    %c0_13 = arith.constant 0 : index
    %19 = vector.load %arg5[%c0_12, %c0_13] : memref<8x128xf32, #tpu.memory_space<vmem>>, vector<8x128xf32>
    %20 = arith.mulf %15, %15 : vector<8x128xf32>
    %21 = arith.addf %19, %20 : vector<8x128xf32>
    %c0_14 = arith.constant 0 : index
    %c0_15 = arith.constant 0 : index
    %22 = vector.load %arg5[%c0_14, %c0_15] : memref<8x128xf32, #tpu.memory_space<vmem>>, vector<8x128xf32>
    tpu.vector_store %arg5[%c0_14, %c0_15], %21 {strides = array<i32>} : memref<8x128xf32, #tpu.memory_space<vmem>>, vector<8x128xf32>,
    return
  }
  func.func @transform_0(%arg0: i32) -> (i32, i32) {
    %c0_i32 = arith.constant 0 : i32
    %c0_i32_0 = arith.constant 0 : i32
    return %arg0, %c0_i32 : i32, i32
  }
  func.func @transform_1(%arg0: i32) -> (i32, i32) {
    %c0_i32 = arith.constant 0 : i32
    %c0_i32_0 = arith.constant 0 : i32
    %c0_i32_1 = arith.constant 0 : i32
    return %c0_i32, %c0_i32_0 : i32, i32
  }
  func.func @transform_2(%arg0: i32) -> (i32, i32) {
    %c0_i32 = arith.constant 0 : i32
    %c0_i32_0 = arith.constant 0 : i32
    return %arg0, %c0_i32 : i32, i32
  }
  func.func @transform_3(%arg0: i32) -> (i32, i32) {
    %c0_i32 = arith.constant 0 : i32
    %c0_i32_0 = arith.constant 0 : i32
    %c0_i32_1 = arith.constant 0 : i32
    return %c0_i32, %c0_i32_0 : i32, i32
  }
  func.func @transform_4(%arg0: i32) -> (i32, i32) {
    %c0_i32 = arith.constant 0 : i32
    %c0_i32_0 = arith.constant 0 : i32
    %c0_i32_1 = arith.constant 0 : i32
    return %c0_i32, %c0_i32_0 : i32, i32
  }
}

</mosaic_0001>

<llo_original>
// kernel: my_hash_head_forward.3
$region0: #{my_hash_head_forward.3}
  #allocation0 [shape = 'u32[]', space=smem, size = 0x4, offset = 0x4, fixed_abs, tag = 'smem constant byte address 0x4 - core index']
  #allocation1 [shape = 'u32[144,128]{1,0:T(1,128)}', space=vmem, size = 0x12000, scoped, tag = 'internal scratch']
  %s0 = inlined_call_operand.vmem [shape: f32[8,128], index: 0, kind: input, shape index: {}, may-alias: {0,3}]
  %s1 = inlined_call_operand.vmem [shape: f32[1,128], index: 1, kind: input, shape index: {}]
  %s2 = inlined_call_operand.vmem [shape: f32[1,128], index: 2, kind: input, shape index: {}]
  %s3 = inlined_call_operand.vmem [shape: f32[8,128], index: 3, kind: output, shape index: {}, may-alias: {0,3}]
  %s4 = sld [smem:[#allocation0]]
  $region22: #{my_hash_head_forward.3} parent=0
    _
  %s6 = ssub.s32 1, %s4
  %s7 = scalar_select 0, %s6, %s4
  // Predicated region
  $region2: #{my_hash_head_forward.3} parent=0 // pred_check
    _
  $region3: #{my_hash_head_forward.3} parent=0 // pred_check_branch
    %9 = sbr.rel (0) target = $region5
  $region4: #{my_hash_head_forward.3} parent=0 // pred_region
    _
  $region5: #{my_hash_head_forward.3} parent=0 // pred_fallthru
    _
  // Predicated region
  $region6: #{my_hash_head_forward.3} parent=0 // pred_check
    _
  $region7: #{my_hash_head_forward.3} parent=0 // pred_check_branch
    %11 = sbr.rel (0) target = $region9
  $region8: #{my_hash_head_forward.3} parent=0 // pred_region
    _
  $region9: #{my_hash_head_forward.3} parent=0 // pred_fallthru
    _
  // Predicated region
  $region10: #{my_hash_head_forward.3} parent=0 // pred_check
    _
  $region11: #{my_hash_head_forward.3} parent=0 // pred_check_branch
    %13 = sbr.rel (0) target = $region13
  $region12: #{my_hash_head_forward.3} parent=0 // pred_region
    _
  $region13: #{my_hash_head_forward.3} parent=0 // pred_fallthru
    _
  %v14 = vld [vmem:[%s0] sm:$0xff]
  %v15 = vld [vmem:[%s1] sm:$0x1]
  %v17 = vlaneseq
  %v18 = vshrl.u32 %v17, 7
  %v19 = vsub.s32 0, %v18
  %v20 = vrot.slane %v15, %v19
  %v22 = vmul.f32 %v14, %v20
  %v23 = vld [vmem:[%s2] sm:$0x1]
  %v25 = vlaneseq
  %v26 = vshrl.u32 %v25, 7
  %v27 = vsub.s32 0, %v26
  %v28 = vrot.slane %v23, %v27
  %v30 = vadd.f32 %v22, %v28
  %v31 = vtanh.pop %v30
  %32 = vst [vmem:[%s3] sm:$0xff] %v31
  // Predicated region
  $region14: #{my_hash_head_forward.3} parent=0 // pred_check
    _
  $region15: #{my_hash_head_forward.3} parent=0 // pred_check_branch
    %34 = sbr.rel (0) target = $region17
  $region16: #{my_hash_head_forward.3} parent=0 // pred_region
    _
  $region17: #{my_hash_head_forward.3} parent=0 // pred_fallthru
    _
  // Predicated region
  $region18: #{my_hash_head_forward.3} parent=0 // pred_check
    _
  $region19: #{my_hash_head_forward.3} parent=0 // pred_check_branch
    %36 = sbr.rel (0) target = $region21
  $region20: #{my_hash_head_forward.3} parent=0 // pred_region
    _
  $region21: #{my_hash_head_forward.3} parent=0 // pred_fallthru
    _

// kernel: my_hash_head_forward.2
$region0: #{my_hash_head_forward.2}
  #allocation0 [shape = 'u32[]', space=smem, size = 0x4, offset = 0x4, fixed_abs, tag = 'smem constant byte address 0x4 - core index']
  #allocation1 [shape = 'u32[144,128]{1,0:T(1,128)}', space=vmem, size = 0x12000, scoped, tag = 'internal scratch']
  %s0 = inlined_call_operand.vmem [shape: f32[8,32], index: 0, kind: input, shape index: {}]
  %s1 = inlined_call_operand.vmem [shape: bf16[32,128], index: 1, kind: input, shape index: {}]
  %s2 = inlined_call_operand.vmem [shape: f32[8,128], index: 2, kind: output, shape index: {0}]
  %s3 = inlined_call_operand.vmem [shape: f32[8,128], index: 3, kind: output, shape index: {1}]
  %s4 = inlined_call_operand.vmem [shape: f32[8,128], index: 4, kind: output, shape index: {2}]
  %5 = xla_tuple %s2, %s3, %s4
  %s6 = sld [smem:[#allocation0]]
  $region38: #{my_hash_head_forward.2} parent=0
    _
  %s8 = ssub.s32 1, %s6
  %s9 = scalar_select 0, %s8, %s6
  // Predicated region
  $region2: #{my_hash_head_forward.2} parent=0 // pred_check
    _
  $region3: #{my_hash_head_forward.2} parent=0 // pred_check_branch
    %11 = sbr.rel (0) target = $region5
  $region4: #{my_hash_head_forward.2} parent=0 // pred_region
    _
  $region5: #{my_hash_head_forward.2} parent=0 // pred_fallthru
    _
  // Predicated region
  $region6: #{my_hash_head_forward.2} parent=0 // pred_check
    _
  $region7: #{my_hash_head_forward.2} parent=0 // pred_check_branch
    %13 = sbr.rel (0) target = $region9
  $region8: #{my_hash_head_forward.2} parent=0 // pred_region
    _
  $region9: #{my_hash_head_forward.2} parent=0 // pred_fallthru
    _
  %p15 = scmp.eq.s32.totalorder 0, 0
  // Predicated region
  $region10: #{my_hash_head_forward.2} parent=0 // pred_check
    %p16 = pneg %p15
  $region11: #{my_hash_head_forward.2} parent=0 // pred_check_branch
    %18 = sbr.rel (%p16) target = $region13
  $region12: #{my_hash_head_forward.2} parent=0 // pred_region
    %19 = vst [vmem:[%s3] sm:$0xff] 0.0
    %20 = vst [vmem:[%s4] sm:$0xff] 0.0
  $region13: #{my_hash_head_forward.2} parent=0 // pred_fallthru
    _
  %v21 = vld [vmem:[%s0] sm:$0xff]
  %v22 = vpack.c.bf16 %v21, %v21
  %v23 = vld [vmem:[%s1] sm:$0xf]
  %v24 = vld [vmem:[%s1 + $0x4] sm:$0xf]
  %v25 = vld [vmem:[%s1 + $0x8] sm:$0xf]
  %v26 = vld [vmem:[%s1 + $0xc] sm:$0xf]
  %v31 = vunpack.c.l.b16 %v23
  %v32 = vunpack.c.l.b16 %v24
  %v33 = vunpack.c.l.b16 %v25
  %v34 = vunpack.c.l.b16 %v26
  %v35 = vpack.c.b16 %v32, %v31
  %v36 = vpack.c.b16 %v34, %v33
  %vm39 = vcmask 261120
  %v41 = vsel %vm39, %v22, 0
  %43 = vmatprep.subr.bf16.mxu0 0
  %44 = vmatpush1.bf16.msra.mxu0 %v35
  %45 = vmatprep.subr.bf16.mxu0 0
  %46 = vmatpush1.bf16.msra.mxu0 %v36
  %47 = vmatprep.subr.bf16.mxu0 0
  %48 = vmatpush1.bf16.msra.mxu0 0
  %49 = vmatprep.subr.bf16.mxu0 0
  %50 = vmatpush1.bf16.msra.mxu0 0
  %51 = vmatprep.subr.bf16.mxu0 0
  %52 = vmatpush1.bf16.msra.mxu0 0
  %53 = vmatprep.subr.bf16.mxu0 0
  %54 = vmatpush1.bf16.msra.mxu0 0
  %55 = vmatprep.subr.bf16.mxu0 0
  %56 = vmatpush1.bf16.msra.mxu0 0
  %57 = vmatprep.subr.bf16.mxu0 0
  %58 = vmatpush1.bf16.msra.mxu0 0
  %59 = vmatprep.subr.bf16.mxu0 0
  %60 = vmatpush1.bf16.msra.mxu0 0
  %61 = vmatprep.subr.bf16.mxu0 0
  %62 = vmatpush1.bf16.msra.mxu0 0
  %63 = vmatprep.subr.bf16.mxu0 0
  %64 = vmatpush1.bf16.msra.mxu0 0
  %65 = vmatprep.subr.bf16.mxu0 0
  %66 = vmatpush1.bf16.msra.mxu0 0
  %67 = vmatprep.subr.bf16.mxu0 0
  %68 = vmatpush1.bf16.msra.mxu0 0
  %69 = vmatprep.subr.bf16.mxu0 0
  %70 = vmatpush1.bf16.msra.mxu0 0
  %71 = vmatprep.subr.bf16.mxu0 0
  %72 = vmatpush1.bf16.msra.mxu0 0
  %73 = vmatprep.subr.bf16.mxu0 0
  %74 = vmatpush1.bf16.msra.mxu0 0
  %75 = vmatprep.mubr.bf16.mxu0 0
  %76 = vmatmul.mubr.bf16.gmra.mrb[0].mxu0 %v41
  %v77 = vpop.f32.mrb[0].mxu0
  %v78 = vadd.f32 0.0, %v77
  %v79 = vpop.f32.mrb[0].mxu0
  %v80 = vpop.f32.mrb[0].mxu0
  %v81 = vpop.f32.mrb[0].mxu0
  %82 = vdwg.mxu0
  %83 = vst [vmem:[%s2] sm:$0xff] %v78
  %s84 = smul.u32 0, 8
  %v85 = vlaneseq
  %v86 = vshrl.u32 %v85, 7
  %v87 = vstv %s84
  %v88 = vadd.s32 %v87, %v86
  %vm89 = vcmp.lt.s32.totalorder %v88, 8
  %v90 = vsel %vm89, %v78, 0.0
  %v91 = vld [vmem:[%s3] sm:$0xff]
  %v92 = vadd.f32 %v91, %v90
  %93 = vst [vmem:[%s3] sm:$0xff] %v92
  %v94 = vld [vmem:[%s4] sm:$0xff]
  %v95 = vmul.f32 %v90, %v90
  %v96 = vadd.f32 %v94, %v95
  %97 = vst [vmem:[%s4] sm:$0xff] %v96
  // Predicated region
  $region14: #{my_hash_head_forward.2} parent=0 // pred_check
    _
  $region15: #{my_hash_head_forward.2} parent=0 // pred_check_branch
    %99 = sbr.rel (0) target = $region17
  $region16: #{my_hash_head_forward.2} parent=0 // pred_region
    _
  $region17: #{my_hash_head_forward.2} parent=0 // pred_fallthru
    _
  // Predicated region
  $region18: #{my_hash_head_forward.2} parent=0 // pred_check
    _
  $region19: #{my_hash_head_forward.2} parent=0 // pred_check_branch
    %101 = sbr.rel (0) target = $region21
  $region20: #{my_hash_head_forward.2} parent=0 // pred_region
    _
  $region21: #{my_hash_head_forward.2} parent=0 // pred_fallthru
    _
  // Predicated region
  $region22: #{my_hash_head_forward.2} parent=0 // pred_check
    _
  $region23: #{my_hash_head_forward.2} parent=0 // pred_check_branch
    %103 = sbr.rel (0) target = $region25
  $region24: #{my_hash_head_forward.2} parent=0 // pred_region
    _
  $region25: #{my_hash_head_forward.2} parent=0 // pred_fallthru
    _
  // Predicated region
  $region26: #{my_hash_head_forward.2} parent=0 // pred_check
    _
  $region27: #{my_hash_head_forward.2} parent=0 // pred_check_branch
    %105 = sbr.rel (0) target = $region29
  $region28: #{my_hash_head_forward.2} parent=0 // pred_region
    _
  $region29: #{my_hash_head_forward.2} parent=0 // pred_fallthru
    _
  // Predicated region
  $region30: #{my_hash_head_forward.2} parent=0 // pred_check
    _
  $region31: #{my_hash_head_forward.2} parent=0 // pred_check_branch
    %107 = sbr.rel (0) target = $region33
  $region32: #{my_hash_head_forward.2} parent=0 // pred_region
    _
  $region33: #{my_hash_head_forward.2} parent=0 // pred_fallthru
    _
  // Predicated region
  $region34: #{my_hash_head_forward.2} parent=0 // pred_check
    _
  $region35: #{my_hash_head_forward.2} parent=0 // pred_check_branch
    %109 = sbr.rel (0) target = $region37
  $region36: #{my_hash_head_forward.2} parent=0 // pred_region
    _
  $region37: #{my_hash_head_forward.2} parent=0 // pred_fallthru
    _

</llo_original>
